<compile_context>
chip_gen: v6e
topology: v6e:2x2x1
jax: 0.10.0
libtpu: 0.0.40
codegen_flags: <defaults>
</compile_context>

<pallas_src>
import functools

import jax
import jax.numpy as jnp
from jax.experimental import pallas as pl
from jax.experimental.pallas import tpu as pltpu


# ----------------------------------------------------------------------------
# Kernel 1: data-dependent row gather  (slots_pref[i] = table[time_slots[i]])
# ----------------------------------------------------------------------------
def _gather_rows_kernel(idx_ref, row_ref, out_ref):
    # idx_ref: scalar-prefetch (B,) int32 in SMEM; it is consumed by the
    # index_map (which picks the table row), so the body is a pure copy.
    del idx_ref
    out_ref[...] = row_ref[...]


def gather_rows(table, indices):
    """table: (T, D); indices: (B,) int -> (B, D) with out[i] = table[indices[i]]."""
    T, D = table.shape
    B = indices.shape[0]

    grid_spec = pltpu.PrefetchScalarGridSpec(
        num_scalar_prefetch=1,
        grid=(B,),
        in_specs=[
            # Data-dependent block index: grid step i fetches table row idx[i].
            pl.BlockSpec((1, D), lambda i, idx_ref: (idx_ref[i], 0)),
        ],
        out_specs=pl.BlockSpec((1, D), lambda i, idx_ref: (i, 0)),
    )

    return pl.pallas_call(
        _gather_rows_kernel,
        out_shape=jax.ShapeDtypeStruct((B, D), table.dtype),
        grid_spec=grid_spec,
        compiler_params=pltpu.CompilerParams(
            dimension_semantics=("parallel",),  # independent rows -> megacore OK
        ),
    )(indices.astype(jnp.int32), table)


# ----------------------------------------------------------------------------
# Kernel 2: EMA update of a single table row (optional branch of forward)
# ----------------------------------------------------------------------------
def _ema_update_kernel(slot_ref, table_ref, new_ref, out_ref, *, keep_rate):
    old = table_ref[...]                                   # (T, D)
    upd = old * keep_rate + new_ref[...] * (1.0 - keep_rate)  # (1,D) broadcasts
    row_ids = jax.lax.broadcasted_iota(jnp.int32, out_ref.shape, 0)
    out_ref[...] = jnp.where(row_ids == slot_ref[0], upd, old).astype(out_ref.dtype)


def ema_update_row(table, slot, new_pref, keep_rate):
    """Return a copy of `table` with row `slot` EMA-updated by `new_pref`."""
    T, D = table.shape
    grid_spec = pltpu.PrefetchScalarGridSpec(
        num_scalar_prefetch=1,
        grid=(1,),
        in_specs=[
            pl.BlockSpec((T, D), lambda i, slot_ref: (0, 0)),
            pl.BlockSpec((1, D), lambda i, slot_ref: (0, 0)),
        ],
        out_specs=pl.BlockSpec((T, D), lambda i, slot_ref: (0, 0)),
    )
    # Note: fine for small time-slot tables; a huge table would instead alias
    # output to input and rewrite only the touched (1, D) block.
    return pl.pallas_call(
        functools.partial(_ema_update_kernel, keep_rate=float(keep_rate)),
        out_shape=jax.ShapeDtypeStruct((T, D), table.dtype),
        grid_spec=grid_spec,
    )(
        jnp.asarray([slot], dtype=jnp.int32),
        table,
        jnp.asarray(new_pref, dtype=table.dtype).reshape(1, D),
    )


# ----------------------------------------------------------------------------
# Module wrapper mirroring TimSloPref.forward semantics
# ----------------------------------------------------------------------------
class TimSloPrefPallas:
    def __init__(self, num_time_slots, d_model, keep_rate, dtype=jnp.float32):
        # Non-trainable state buffer (torch Variable with requires_grad=False),
        # held functionally as a plain jnp array.
        self.preference = jnp.zeros((num_time_slots + 1, d_model), dtype=dtype)
        self.keep_rate = float(keep_rate)

    def forward(self, time_slots, upd_time_slot=-1, preference=None):
        if upd_time_slot != -1:
            self.preference = ema_update_row(
                self.preference, upd_time_slot, preference, self.keep_rate
            )
        return gather_rows(self.preference, time_slots)


# ----------------------------------------------------------------------------
# Self-test
# ----------------------------------------------------------------------------
if __name__ == "__main__":
    num_time_slots = 24   # e.g. hours of the day
    d_model = 128         # lane-dense hidden size
    keep_rate = 0.8
    batch = 8

    key = jax.random.PRNGKey(0)
    k_table, k_slots, k_pref = jax.random.split(key, 3)

    module = TimSloPrefPallas(num_time_slots, d_model, keep_rate)
    # Give the state buffer non-trivial values (stands in for prior updates).
    module.preference = jax.random.normal(
        k_table, (num_time_slots + 1, d_model), dtype=jnp.float32
    )

    time_slots = jax.random.randint(
        k_slots, (batch,), 0, num_time_slots + 1, dtype=jnp.int32
    )
    new_pref = jax.random.normal(k_pref, (d_model,), dtype=jnp.float32)

    table_before = module.preference

    # Forward with a state update on slot 3, then gather.
    out = module.forward(time_slots, upd_time_slot=3, preference=new_pref)
    out = jax.block_until_ready(out)

    # Pure-JAX reference of the PyTorch semantics.
    ref_table = table_before.at[3].set(
        table_before[3] * keep_rate + new_pref * (1.0 - keep_rate)
    )
    ref_out = ref_table[time_slots]

    assert out.shape == (batch, d_model), out.shape
    assert jnp.allclose(module.preference, ref_table, rtol=1e-6, atol=1e-6)
    assert jnp.allclose(out, ref_out, rtol=1e-6, atol=1e-6), (out, ref_out)

    # Plain gather path (default upd_time_slot == -1).
    out2 = jax.block_until_ready(module.forward(time_slots))
    assert jnp.allclose(out2, ref_out, rtol=1e-6, atol=1e-6)

    print("KERNEL_OK")
</pallas_src>

<mosaic_0001>
module attributes {stable_mosaic.version = 11 : i64} {
  func.func @_ema_update_kernel(%arg0: i32, %arg1: memref<1xi32, #tpu.memory_space<smem>>, %arg2: memref<25x128xf32, #tpu.memory_space<vmem>>, %arg3: memref<1x128xf32, #tpu.memory_space<vmem>>, %arg4: memref<25x128xf32, #tpu.memory_space<vmem>>) attributes {dimension_semantics = [#tpu.dimension_semantics<arbitrary>], iteration_bounds = array<i64: 1>, scalar_prefetch = 1 : i64, scratch_operands = 0 : i64, tpu.core_type = #tpu.core_type<tc>, window_params = [{pipeline_mode = #tpu.pipeline_mode<synchronous>, transform_indices = @transform_0, window_bounds = array<i64: 25, 128>}, {pipeline_mode = #tpu.pipeline_mode<synchronous>, transform_indices = @transform_1, window_bounds = array<i64: 1, 128>}, {pipeline_mode = #tpu.pipeline_mode<synchronous>, transform_indices = @transform_2, window_bounds = array<i64: 25, 128>}]} {
    %c0 = arith.constant 0 : index
    %c0_0 = arith.constant 0 : index
    %0 = vector.load %arg2[%c0, %c0_0] : memref<25x128xf32, #tpu.memory_space<vmem>>, vector<25x128xf32>
    %cst = arith.constant 8.000000e-01 : f32
    %1 = vector.broadcast %cst : f32 to vector<25x128xf32>
    %2 = arith.mulf %0, %1 : vector<25x128xf32>
    %c0_1 = arith.constant 0 : index
    %c0_2 = arith.constant 0 : index
    %3 = vector.load %arg3[%c0_1, %c0_2] : memref<1x128xf32, #tpu.memory_space<vmem>>, vector<1x128xf32>
    %cst_3 = arith.constant 2.000000e-01 : f32
    %4 = vector.broadcast %cst_3 : f32 to vector<1x128xf32>
    %5 = arith.mulf %3, %4 : vector<1x128xf32>
    %6 = vector.broadcast %5 : vector<1x128xf32> to vector<25x128xf32>
    %7 = arith.addf %2, %6 : vector<25x128xf32>
    %8 = tpu.iota {dimensions = array<i32: 0>} : vector<25x128xi32>
    %c0_4 = arith.constant 0 : index
    %9 = memref.load %arg1[%c0_4] : memref<1xi32, #tpu.memory_space<smem>>
    %10 = vector.broadcast %9 : i32 to vector<25x128xi32>
    %11 = arith.cmpi eq, %8, %10 : vector<25x128xi32>
    %12 = arith.select %11, %7, %0 : vector<25x128xi1>, vector<25x128xf32>
    %c0_5 = arith.constant 0 : index
    %c0_6 = arith.constant 0 : index
    %13 = vector.load %arg4[%c0_5, %c0_6] : memref<25x128xf32, #tpu.memory_space<vmem>>, vector<25x128xf32>
    tpu.vector_store %arg4[%c0_5, %c0_6], %12 {strides = array<i32>} : memref<25x128xf32, #tpu.memory_space<vmem>>, vector<25x128xf32>,
    return
  }
  func.func @transform_0(%arg0: i32, %arg1: memref<1xi32, #tpu.memory_space<smem>>) -> (i32, i32) {
    %c0_i32 = arith.constant 0 : i32
    %c0_i32_0 = arith.constant 0 : i32
    %c0_i32_1 = arith.constant 0 : i32
    return %c0_i32, %c0_i32_0 : i32, i32
  }
  func.func @transform_1(%arg0: i32, %arg1: memref<1xi32, #tpu.memory_space<smem>>) -> (i32, i32) {
    %c0_i32 = arith.constant 0 : i32
    %c0_i32_0 = arith.constant 0 : i32
    %c0_i32_1 = arith.constant 0 : i32
    return %c0_i32, %c0_i32_0 : i32, i32
  }
  func.func @transform_2(%arg0: i32, %arg1: memref<1xi32, #tpu.memory_space<smem>>) -> (i32, i32) {
    %c0_i32 = arith.constant 0 : i32
    %c0_i32_0 = arith.constant 0 : i32
    %c0_i32_1 = arith.constant 0 : i32
    return %c0_i32, %c0_i32_0 : i32, i32
  }
}

</mosaic_0001>

<llo_original>
// kernel: tpu_custom_call.1
$region0: #{tpu_custom_call.1}
  #allocation0 [shape = 'u32[]', space=smem, size = 0x4, offset = 0x4, fixed_abs, tag = 'smem constant byte address 0x4 - core index']
  #allocation1 [shape = 'u32[144,128]{1,0:T(1,128)}', space=vmem, size = 0x12000, scoped, tag = 'internal scratch']
  #allocation2 [shape = 's32[1]{0}', space=sflag, size = 0x4, scoped, tag = 'scoped memory for tpu_custom_call.1']
  #allocation3 [shape = 's32[1]{0:T(128)S(6)}', space=smem, size = 0x200, scoped, tag = 'prefetched SMEM operand 0']
  %s0 = inlined_call_operand.<no memory space> [shape: s32[1], index: 0, kind: input, shape index: {}]
  %s1 = inlined_call_operand.hbm [shape: f32[25,128], index: 1, kind: input, shape index: {}]
  %s2 = inlined_call_operand.vmem [shape: f32[1,128], index: 2, kind: input, shape index: {}]
  %s3 = inlined_call_operand.hbm [shape: f32[25,128], index: 3, kind: output, shape index: {}]
  %s4 = sld [smem:[#allocation0]]
  $region22: #{tpu_custom_call.1} parent=0
    _
  %s6 = ssub.s32 1, %s4
  %s7 = scalar_select 0, %s6, %s4
  %8 = sst [smem:[#allocation3]] %s0
  $region1: #{tpu_custom_call.1} parent=0
    #allocation4 [shape = 'u8[16384]{0}', space=vmem, size = 0x4000, scoped, tag = 'input window, operand 1, single buffered']
    #allocation5 [shape = 's32[1]{0}', space=sflag, size = 0x4, scoped, tag = 'scoped memory for tpu_custom_call.1']
    #allocation6 [shape = 's32[1]{0}', space=sflag, size = 0x4, scoped, tag = 'scoped memory for tpu_custom_call.1']
    #allocation7 [shape = 'u8[16384]{0}', space=vmem, size = 0x4000, scoped, tag = 'output window, operand 0, single buffered']
    %9 = vsyncpa [#allocation5], 0
    %10 = vsyncpa [#allocation6], 0
    // Predicated region
    $region2: #{tpu_custom_call.1} parent=1 // pred_check
      _
    $region3: #{tpu_custom_call.1} parent=1 // pred_check_branch
      %12 = sbr.rel (0) target = $region5
    $region4: #{tpu_custom_call.1} parent=1 // pred_region
      %s14 = ssub.s32 512, 512
      %15 = vsyncadd [#allocation5], %s14
      %s16 = sshll.u32 [#allocation4], 4
      %s17 = int_to_ptr.vmem [resolvable:$true] %s16
      %22 = dma.hbm_to_vmem [thread:$0]  %s1, 512, %s17, [#allocation5], 128, 128, 8
    $region5: #{tpu_custom_call.1} parent=1 // pred_fallthru
      _
    // Predicated region
    $region6: #{tpu_custom_call.1} parent=1 // pred_check
      _
    $region7: #{tpu_custom_call.1} parent=1 // pred_check_branch
      %24 = sbr.rel (0) target = $region9
    $region8: #{tpu_custom_call.1} parent=1 // pred_region
      _
    $region9: #{tpu_custom_call.1} parent=1 // pred_fallthru
      _
    // Predicated region
    $region10: #{tpu_custom_call.1} parent=1 // pred_check
      _
    $region11: #{tpu_custom_call.1} parent=1 // pred_check_branch
      %26 = sbr.rel (0) target = $region13
    $region12: #{tpu_custom_call.1} parent=1 // pred_region
      %27 = dma.done [#allocation5], 512
    $region13: #{tpu_custom_call.1} parent=1 // pred_fallthru
      _
    %v28 = vld [vmem:[#allocation4] sm:$0xff]
    %v29 = vld [vmem:[#allocation4 + $0x8] sm:$0xff]
    %v30 = vld [vmem:[#allocation4 + $0x10] sm:$0xff]
    %v31 = vld [vmem:[#allocation4 + $0x18] sm:$0x1]
    %v32 = vmul.f32 %v28, 0.8
    %v33 = vmul.f32 %v29, 0.8
    %v34 = vmul.f32 %v30, 0.8
    %v35 = vmul.f32 %v31, 0.8
    %v36 = vld [vmem:[%s2] sm:$0x1]
    %v37 = vmul.f32 %v36, 0.2
    %v39 = vlaneseq
    %v40 = vshrl.u32 %v39, 7
    %v41 = vsub.s32 0, %v40
    %v42 = vrot.slane %v37, %v41
    %v44 = vadd.f32 %v32, %v42
    %v45 = vadd.f32 %v33, %v42
    %v46 = vadd.f32 %v34, %v42
    %v47 = vadd.f32 %v35, %v42
    %v48 = vlaneseq
    %v49 = vshrl.u32 %v48, 7
    %v50 = vadd.s32 %v49, 8
    %v51 = vadd.s32 %v49, 16
    %v52 = vadd.s32 %v49, 24
    %s53 = sld [smem:[#allocation3]]
    %v54 = vstv %s53
    %vm55 = vcmp.eq.s32.totalorder %v49, %v54
    %vm56 = vcmp.eq.s32.totalorder %v50, %v54
    %vm57 = vcmp.eq.s32.totalorder %v51, %v54
    %vm58 = vcmp.eq.s32.totalorder %v52, %v54
    %v59 = vsel %vm55, %v44, %v28
    %v60 = vsel %vm56, %v45, %v29
    %v61 = vsel %vm57, %v46, %v30
    %v62 = vsel %vm58, %v47, %v31
    %63 = vst [vmem:[#allocation7] sm:$0xff] %v59
    %64 = vst [vmem:[#allocation7 + $0x8] sm:$0xff] %v60
    %65 = vst [vmem:[#allocation7 + $0x10] sm:$0xff] %v61
    %66 = vst [vmem:[#allocation7 + $0x18] sm:$0x1] %v62
    // Predicated region
    $region14: #{tpu_custom_call.1} parent=1 // pred_check
      _
    $region15: #{tpu_custom_call.1} parent=1 // pred_check_branch
      %68 = sbr.rel (0) target = $region17
    $region16: #{tpu_custom_call.1} parent=1 // pred_region
      %s70 = ssub.s32 512, 512
      %71 = vsyncadd [#allocation6], %s70
      %s72 = sshll.u32 [#allocation7], 4
      %s73 = int_to_ptr.vmem [resolvable:$true] %s72
      %78 = dma.vmem_to_hbm [thread:$0]  %s73, 512, %s3, [#allocation6], 128, 128, 8
    $region17: #{tpu_custom_call.1} parent=1 // pred_fallthru
      _
    // Predicated region
    $region18: #{tpu_custom_call.1} parent=1 // pred_check
      _
    $region19: #{tpu_custom_call.1} parent=1 // pred_check_branch
      %80 = sbr.rel (0) target = $region21
    $region20: #{tpu_custom_call.1} parent=1 // pred_region
      %81 = dma.done [#allocation6], 512
    $region21: #{tpu_custom_call.1} parent=1 // pred_fallthru
      _
    %82 = vsyncpa [#allocation5], 1
    %83 = vsyncpa [#allocation6], 1

</llo_original>
